<compile_context>
chip_gen: v5e
topology: v5e:2x2
jax: 0.10.0
libtpu: 0.0.40
codegen_flags: <defaults>
</compile_context>

<pallas_src>
import jax
import jax.numpy as jnp
from jax.experimental import pallas as pl
from jax.experimental.pallas import tpu as pltpu


def _leaky_relu(x, negative_slope=0.01):
    # maximum(x, a*x) == LeakyReLU(x) for 0 < a < 1; 2 VALU ops.
    return jnp.maximum(x, negative_slope * x)


def _round_up(x, m):
    return ((x + m - 1) // m) * m


def critic_kernel(s_ref, a_ref, w11_ref, w12_ref, b1_ref, w2_ref, b2_ref,
                  w4_ref, b4_ref, w5_ref, b5_ref, out_ref):
    # Layer 1: fc1_1(state) + fc1_2(action), biases pre-folded (b1 = b11+b12).
    # Activations cast to bf16 in-kernel; MXU accumulates in f32.
    h = (jnp.dot(s_ref[...].astype(jnp.bfloat16), w11_ref[...],
                 preferred_element_type=jnp.float32)
         + jnp.dot(a_ref[...].astype(jnp.bfloat16), w12_ref[...],
                   preferred_element_type=jnp.float32)
         + b1_ref[...])
    h = _leaky_relu(h)

    # Layer 2 (fc2): bf16 operands, f32 accumulate; elementwise stays in f32.
    h = (jnp.dot(h.astype(jnp.bfloat16), w2_ref[...],
                 preferred_element_type=jnp.float32) + b2_ref[...])
    h = _leaky_relu(h)

    # Layer 3 (fc4).
    h = (jnp.dot(h.astype(jnp.bfloat16), w4_ref[...],
                 preferred_element_type=jnp.float32) + b4_ref[...])
    h = _leaky_relu(h)

    # Layer 4 (fc5): on the MXU against a zero-padded (H, 128) weight; only
    # column 0 is real.  Keeps the VPU/XLU path free; HBM output stays width 1.
    r = jnp.dot(h.astype(jnp.bfloat16), w5_ref[...],
                preferred_element_type=jnp.float32)
    out_ref[...] = (r[:, 0:1] + b5_ref[...]).astype(out_ref.dtype)


def prepare_params(params):
    """One-time parameter prep (per parameter update, NOT per forward call).

    Casts weights to bf16, folds b1 = b11 + b12, zero-pads w5 to (H, 128)."""
    H = params["w11"].shape[1]
    w5 = params["w5"].reshape(H, 1).astype(jnp.bfloat16)
    w5_pad = jnp.pad(w5, ((0, 0), (0, 128 - 1)))          # (H, 128), col 0 real
    return dict(
        w11=params["w11"].astype(jnp.bfloat16),            # (S, H)
        w12=params["w12"].astype(jnp.bfloat16),            # (A, H)
        b1=(params["b11"] + params["b12"]).astype(jnp.float32),   # (1, H)
        w2=params["w2"].astype(jnp.bfloat16),               # (H, M)
        b2=params["b2"].astype(jnp.float32),                # (1, M)
        w4=params["w4"].astype(jnp.bfloat16),               # (M, H)
        b4=params["b4"].astype(jnp.float32),                # (1, H)
        w5=w5_pad,                                          # (H, 128)
        b5=params["b5"].reshape(1, 1).astype(jnp.float32),  # (1, 1)
    )


def _select_tiling(B, max_tile_b):
    """Pick (tile_b, num_tiles) so real work (not padding) fills the grid."""
    assert max_tile_b % 16 == 0, "max_tile_b must be a multiple of 16 (bf16)"
    if B <= max_tile_b:
        return _round_up(B, 16), 1                 # single tile, minimal pad
    if B <= 2 * max_tile_b:
        return _round_up((B + 1) // 2, 16), 2      # split real rows (v7x 2 TCs)
    return max_tile_b, pl.cdiv(B, max_tile_b)      # large B: big tiles


def critic_forward(state, action, prepared, *, max_tile_b=1024):
    """Runs the Critic MLP with a grid over batch tiles.

    state:    [B, num_states]  f32
    action:   [B, num_actions] f32
    prepared: output of prepare_params()
    """
    B, S = state.shape
    A = action.shape[1]
    H = prepared["w11"].shape[1]
    M = prepared["w2"].shape[1]

    tile_b, num_tiles = _select_tiling(B, max_tile_b)
    assert tile_b % 16 == 0
    B_pad = tile_b * num_tiles
    if B_pad != B:
        state = jnp.pad(state, ((0, B_pad - B), (0, 0)))
        action = jnp.pad(action, ((0, B_pad - B), (0, 0)))

    def batch_spec(ncols):
        return pl.BlockSpec((tile_b, ncols), lambda i: (i, 0))

    def const_spec(shape):
        # Block index never changes: weights/biases are fetched once and stay
        # resident in VMEM for the whole grid.
        return pl.BlockSpec(shape, lambda i: (0, 0))

    # Advisory cost estimate from the REAL batch size.
    flops = 2 * B * (S * H + A * H + H * M + M * H + H)
    bytes_accessed = (B * (S + A) * 4
                      + (prepared["w11"].size + prepared["w12"].size
                         + prepared["w2"].size + prepared["w4"].size
                         + prepared["w5"].size) * 2
                      + (prepared["b1"].size + prepared["b2"].size
                         + prepared["b4"].size + prepared["b5"].size) * 4
                      + B * 4)
    cost = pl.CostEstimate(flops=flops, transcendentals=0,
                           bytes_accessed=bytes_accessed)

    # Rough per-step VMEM demand (double-buffered IO + live f32 intermediates).
    vmem_need = (
        2 * tile_b * (S + A) * 4
        + 2 * (prepared["w11"].size + prepared["w12"].size
               + prepared["w2"].size + prepared["w4"].size
               + prepared["w5"].size) * 2
        + 2 * (prepared["b1"].size + prepared["b2"].size
               + prepared["b4"].size + prepared["b5"].size) * 4
        + 2 * tile_b * 4
        + 4 * tile_b * max(H, M, 128) * 4
    )
    vmem_limit = None
    if vmem_need > 24 * 1024 * 1024:
        vmem_limit = min(int(vmem_need * 5 // 4), 100 * 1024 * 1024)

    out = pl.pallas_call(
        critic_kernel,
        out_shape=jax.ShapeDtypeStruct((B_pad, 1), jnp.float32),
        grid_spec=pltpu.PrefetchScalarGridSpec(
            num_scalar_prefetch=0,
            grid=(num_tiles,),
            in_specs=[
                batch_spec(S),                                   # state tile
                batch_spec(A),                                   # action tile
                const_spec((S, H)), const_spec((A, H)),          # fc1_1 / fc1_2
                const_spec((1, H)),                              # b1 = b11+b12
                const_spec((H, M)), const_spec((1, M)),          # fc2
                const_spec((M, H)), const_spec((1, H)),          # fc4
                const_spec((H, 128)), const_spec((1, 1)),        # fc5 (padded)
            ],
            out_specs=pl.BlockSpec((tile_b, 1), lambda i: (i, 0)),
        ),
        compiler_params=pltpu.CompilerParams(
            dimension_semantics=("parallel",),
            vmem_limit_bytes=vmem_limit),
        cost_estimate=cost,
    )(state, action,
      prepared["w11"], prepared["w12"], prepared["b1"],
      prepared["w2"], prepared["b2"],
      prepared["w4"], prepared["b4"],
      prepared["w5"], prepared["b5"])

    return out[:B]


def init_params(key, num_states, num_actions, hidden, middle):
    """Deterministic synthetic init (PyTorch Linear-like uniform bounds).

    Weights are stored pre-transposed as (in_features, out_features)."""
    def linear(k, fan_in, fan_out):
        kw, kb = jax.random.split(k)
        bound = 1.0 / jnp.sqrt(fan_in)
        w = jax.random.uniform(kw, (fan_in, fan_out), jnp.float32, -bound, bound)
        b = jax.random.uniform(kb, (1, fan_out), jnp.float32, -bound, bound)
        return w, b

    k1, k2, k3, k4, k5 = jax.random.split(key, 5)
    w11, b11 = linear(k1, num_states, hidden)
    w12, b12 = linear(k2, num_actions, hidden)
    w2, b2 = linear(k3, hidden, middle)
    w4, b4 = linear(k4, middle, hidden)
    w5, b5 = linear(k5, hidden, 1)
    return dict(w11=w11, b11=b11, w12=w12, b12=b12,
                w2=w2, b2=b2, w4=w4, b4=b4, w5=w5, b5=b5)


def critic_reference_matched(state, action, p):
    """Pure-JAX reference with the SAME bf16-operand / f32-accumulate math."""
    h = (jnp.dot(state.astype(jnp.bfloat16), p["w11"],
                 preferred_element_type=jnp.float32)
         + jnp.dot(action.astype(jnp.bfloat16), p["w12"],
                   preferred_element_type=jnp.float32)
         + p["b1"])
    h = _leaky_relu(h)
    h = jnp.dot(h.astype(jnp.bfloat16), p["w2"],
                preferred_element_type=jnp.float32) + p["b2"]
    h = _leaky_relu(h)
    h = jnp.dot(h.astype(jnp.bfloat16), p["w4"],
                preferred_element_type=jnp.float32) + p["b4"]
    h = _leaky_relu(h)
    r = jnp.dot(h.astype(jnp.bfloat16), p["w5"],
                preferred_element_type=jnp.float32)
    return r[:, 0:1] + p["b5"]


def critic_reference_f32(state, action, p):
    """Full-f32 reference matching the original PyTorch module exactly."""
    h = state @ p["w11"] + p["b11"] + action @ p["w12"] + p["b12"]
    h = _leaky_relu(h)
    h = _leaky_relu(h @ p["w2"] + p["b2"])
    h = _leaky_relu(h @ p["w4"] + p["b4"])
    return h @ p["w5"] + p["b5"]


if __name__ == "__main__":
    # Small shapes consistent with the module (hidden/middle scaled down).
    B, NUM_STATES, NUM_ACTIONS = 8, 32, 16
    HIDDEN, MIDDLE = 128, 128

    key = jax.random.PRNGKey(0)
    kp, ks, ka = jax.random.split(key, 3)
    params = init_params(kp, NUM_STATES, NUM_ACTIONS, HIDDEN, MIDDLE)
    state = jax.random.normal(ks, (B, NUM_STATES), jnp.float32)
    action = jax.random.normal(ka, (B, NUM_ACTIONS), jnp.float32)

    prepared = prepare_params(params)   # one-time parameter prep
    out = critic_forward(state, action, prepared)
    out = jax.block_until_ready(out)
    assert out.shape == (B, 1)

    # Exact-math check against a reference using the same bf16 operand casts.
    ref_bf16 = critic_reference_matched(state, action, prepared)
    assert jnp.allclose(out, ref_bf16, atol=2e-3, rtol=2e-3), \
        "mismatch vs bf16-matched reference"

    # Loose fidelity check against the original full-f32 module semantics
    # (bf16 operand rounding is the only approximation introduced).
    ref_f32 = critic_reference_f32(state, action, params)
    assert jnp.allclose(out, ref_f32, atol=1e-1, rtol=1e-1), \
        "mismatch vs f32 reference"

    print("KERNEL_OK")
</pallas_src>

<mosaic_0001>
module attributes {stable_mosaic.version = 11 : i64} {
  func.func @critic_kernel(%arg0: i32, %arg1: memref<16x32xf32, #tpu.memory_space<vmem>>, %arg2: memref<16x16xf32, #tpu.memory_space<vmem>>, %arg3: memref<32x128xbf16, #tpu.memory_space<vmem>>, %arg4: memref<16x128xbf16, #tpu.memory_space<vmem>>, %arg5: memref<1x128xf32, #tpu.memory_space<vmem>>, %arg6: memref<128x128xbf16, #tpu.memory_space<vmem>>, %arg7: memref<1x128xf32, #tpu.memory_space<vmem>>, %arg8: memref<128x128xbf16, #tpu.memory_space<vmem>>, %arg9: memref<1x128xf32, #tpu.memory_space<vmem>>, %arg10: memref<128x128xbf16, #tpu.memory_space<vmem>>, %arg11: memref<1x1xf32, #tpu.memory_space<vmem>>, %arg12: memref<16x1xf32, #tpu.memory_space<vmem>>) attributes {dimension_semantics = [#tpu.dimension_semantics<parallel>], iteration_bounds = array<i64: 1>, scalar_prefetch = 0 : i64, scratch_operands = 0 : i64, tpu.core_type = #tpu.core_type<tc>, window_params = [{transform_indices = @transform_0, window_bounds = array<i64: 16, 32>}, {transform_indices = @transform_1, window_bounds = array<i64: 16, 16>}, {pipeline_mode = #tpu.pipeline_mode<synchronous>, transform_indices = @transform_2, window_bounds = array<i64: 32, 128>}, {pipeline_mode = #tpu.pipeline_mode<synchronous>, transform_indices = @transform_3, window_bounds = array<i64: 16, 128>}, {pipeline_mode = #tpu.pipeline_mode<synchronous>, transform_indices = @transform_4, window_bounds = array<i64: 1, 128>}, {pipeline_mode = #tpu.pipeline_mode<synchronous>, transform_indices = @transform_5, window_bounds = array<i64: 128, 128>}, {pipeline_mode = #tpu.pipeline_mode<synchronous>, transform_indices = @transform_6, window_bounds = array<i64: 1, 128>}, {pipeline_mode = #tpu.pipeline_mode<synchronous>, transform_indices = @transform_7, window_bounds = array<i64: 128, 128>}, {pipeline_mode = #tpu.pipeline_mode<synchronous>, transform_indices = @transform_8, window_bounds = array<i64: 1, 128>}, {pipeline_mode = #tpu.pipeline_mode<synchronous>, transform_indices = @transform_9, window_bounds = array<i64: 128, 128>}, {pipeline_mode = #tpu.pipeline_mode<synchronous>, transform_indices = @transform_10, window_bounds = array<i64: 1, 1>}, {transform_indices = @transform_11, window_bounds = array<i64: 16, 1>}]} {
    %c0 = arith.constant 0 : index
    %c0_0 = arith.constant 0 : index
    %0 = vector.load %arg1[%c0, %c0_0] : memref<16x32xf32, #tpu.memory_space<vmem>>, vector<16x32xf32>
    %1 = arith.truncf %0 : vector<16x32xf32> to vector<16x32xbf16>
    %c0_1 = arith.constant 0 : index
    %c0_2 = arith.constant 0 : index
    %2 = vector.load %arg3[%c0_1, %c0_2] : memref<32x128xbf16, #tpu.memory_space<vmem>>, vector<32x128xbf16>
    %cst = arith.constant dense<0.000000e+00> : vector<16x128xf32>
    %3 = tpu.matmul %1, %2, %cst {dimension_numbers = #tpu.dot_dimension_numbers<[1], [0], [0], [1], [0, 0, 1, 1], [], []>} : vector<16x32xbf16>, vector<32x128xbf16>, vector<16x128xf32> -> vector<16x128xf32>
    %c0_3 = arith.constant 0 : index
    %c0_4 = arith.constant 0 : index
    %4 = vector.load %arg2[%c0_3, %c0_4] : memref<16x16xf32, #tpu.memory_space<vmem>>, vector<16x16xf32>
    %5 = arith.truncf %4 : vector<16x16xf32> to vector<16x16xbf16>
    %c0_5 = arith.constant 0 : index
    %c0_6 = arith.constant 0 : index
    %6 = vector.load %arg4[%c0_5, %c0_6] : memref<16x128xbf16, #tpu.memory_space<vmem>>, vector<16x128xbf16>
    %cst_7 = arith.constant dense<0.000000e+00> : vector<16x128xf32>
    %7 = tpu.matmul %5, %6, %cst_7 {dimension_numbers = #tpu.dot_dimension_numbers<[1], [0], [0], [1], [0, 0, 1, 1], [], []>} : vector<16x16xbf16>, vector<16x128xbf16>, vector<16x128xf32> -> vector<16x128xf32>
    %8 = arith.addf %3, %7 : vector<16x128xf32>
    %c0_8 = arith.constant 0 : index
    %c0_9 = arith.constant 0 : index
    %9 = vector.load %arg5[%c0_8, %c0_9] : memref<1x128xf32, #tpu.memory_space<vmem>>, vector<1x128xf32>
    %10 = vector.broadcast %9 : vector<1x128xf32> to vector<16x128xf32>
    %11 = arith.addf %8, %10 : vector<16x128xf32>
    %cst_10 = arith.constant 0.00999999977 : f32
    %12 = vector.broadcast %cst_10 : f32 to vector<16x128xf32>
    %13 = arith.mulf %12, %11 : vector<16x128xf32>
    %14 = arith.maximumf %11, %13 : vector<16x128xf32>
    %15 = arith.truncf %14 : vector<16x128xf32> to vector<16x128xbf16>
    %c0_11 = arith.constant 0 : index
    %c0_12 = arith.constant 0 : index
    %16 = vector.load %arg6[%c0_11, %c0_12] : memref<128x128xbf16, #tpu.memory_space<vmem>>, vector<128x128xbf16>
    %cst_13 = arith.constant dense<0.000000e+00> : vector<16x128xf32>
    %17 = tpu.matmul %15, %16, %cst_13 {dimension_numbers = #tpu.dot_dimension_numbers<[1], [0], [0], [1], [0, 0, 1, 1], [], []>} : vector<16x128xbf16>, vector<128x128xbf16>, vector<16x128xf32> -> vector<16x128xf32>
    %c0_14 = arith.constant 0 : index
    %c0_15 = arith.constant 0 : index
    %18 = vector.load %arg7[%c0_14, %c0_15] : memref<1x128xf32, #tpu.memory_space<vmem>>, vector<1x128xf32>
    %19 = vector.broadcast %18 : vector<1x128xf32> to vector<16x128xf32>
    %20 = arith.addf %17, %19 : vector<16x128xf32>
    %cst_16 = arith.constant 0.00999999977 : f32
    %21 = vector.broadcast %cst_16 : f32 to vector<16x128xf32>
    %22 = arith.mulf %21, %20 : vector<16x128xf32>
    %23 = arith.maximumf %20, %22 : vector<16x128xf32>
    %24 = arith.truncf %23 : vector<16x128xf32> to vector<16x128xbf16>
    %c0_17 = arith.constant 0 : index
    %c0_18 = arith.constant 0 : index
    %25 = vector.load %arg8[%c0_17, %c0_18] : memref<128x128xbf16, #tpu.memory_space<vmem>>, vector<128x128xbf16>
    %cst_19 = arith.constant dense<0.000000e+00> : vector<16x128xf32>
    %26 = tpu.matmul %24, %25, %cst_19 {dimension_numbers = #tpu.dot_dimension_numbers<[1], [0], [0], [1], [0, 0, 1, 1], [], []>} : vector<16x128xbf16>, vector<128x128xbf16>, vector<16x128xf32> -> vector<16x128xf32>
    %c0_20 = arith.constant 0 : index
    %c0_21 = arith.constant 0 : index
    %27 = vector.load %arg9[%c0_20, %c0_21] : memref<1x128xf32, #tpu.memory_space<vmem>>, vector<1x128xf32>
    %28 = vector.broadcast %27 : vector<1x128xf32> to vector<16x128xf32>
    %29 = arith.addf %26, %28 : vector<16x128xf32>
    %cst_22 = arith.constant 0.00999999977 : f32
    %30 = vector.broadcast %cst_22 : f32 to vector<16x128xf32>
    %31 = arith.mulf %30, %29 : vector<16x128xf32>
    %32 = arith.maximumf %29, %31 : vector<16x128xf32>
    %33 = arith.truncf %32 : vector<16x128xf32> to vector<16x128xbf16>
    %c0_23 = arith.constant 0 : index
    %c0_24 = arith.constant 0 : index
    %34 = vector.load %arg10[%c0_23, %c0_24] : memref<128x128xbf16, #tpu.memory_space<vmem>>, vector<128x128xbf16>
    %cst_25 = arith.constant dense<0.000000e+00> : vector<16x128xf32>
    %35 = tpu.matmul %33, %34, %cst_25 {dimension_numbers = #tpu.dot_dimension_numbers<[1], [0], [0], [1], [0, 0, 1, 1], [], []>} : vector<16x128xbf16>, vector<128x128xbf16>, vector<16x128xf32> -> vector<16x128xf32>
    %36 = vector.extract_strided_slice %35 {offsets = [0, 0], sizes = [16, 1], strides = [1, 1]} : vector<16x128xf32> to vector<16x1xf32>
    %c0_26 = arith.constant 0 : index
    %c0_27 = arith.constant 0 : index
    %37 = vector.load %arg11[%c0_26, %c0_27] : memref<1x1xf32, #tpu.memory_space<vmem>>, vector<1x1xf32>
    %38 = vector.broadcast %37 : vector<1x1xf32> to vector<16x1xf32>
    %39 = arith.addf %36, %38 : vector<16x1xf32>
    %c0_28 = arith.constant 0 : index
    %c0_29 = arith.constant 0 : index
    %40 = vector.load %arg12[%c0_28, %c0_29] : memref<16x1xf32, #tpu.memory_space<vmem>>, vector<16x1xf32>
    tpu.vector_store %arg12[%c0_28, %c0_29], %39 {strides = array<i32>} : memref<16x1xf32, #tpu.memory_space<vmem>>, vector<16x1xf32>,
    return
  }
  func.func @transform_0(%arg0: i32) -> (i32, i32) {
    %c0_i32 = arith.constant 0 : i32
    %c0_i32_0 = arith.constant 0 : i32
    return %arg0, %c0_i32 : i32, i32
  }
  func.func @transform_1(%arg0: i32) -> (i32, i32) {
    %c0_i32 = arith.constant 0 : i32
    %c0_i32_0 = arith.constant 0 : i32
    return %arg0, %c0_i32 : i32, i32
  }
  func.func @transform_2(%arg0: i32) -> (i32, i32) {
    %c0_i32 = arith.constant 0 : i32
    %c0_i32_0 = arith.constant 0 : i32
    %c0_i32_1 = arith.constant 0 : i32
    return %c0_i32, %c0_i32_0 : i32, i32
  }
  func.func @transform_3(%arg0: i32) -> (i32, i32) {
    %c0_i32 = arith.constant 0 : i32
    %c0_i32_0 = arith.constant 0 : i32
    %c0_i32_1 = arith.constant 0 : i32
    return %c0_i32, %c0_i32_0 : i32, i32
  }
  func.func @transform_4(%arg0: i32) -> (i32, i32) {
    %c0_i32 = arith.constant 0 : i32
    %c0_i32_0 = arith.constant 0 : i32
    %c0_i32_1 = arith.constant 0 : i32
    return %c0_i32, %c0_i32_0 : i32, i32
  }
  func.func @transform_5(%arg0: i32) -> (i32, i32) {
    %c0_i32 = arith.constant 0 : i32
    %c0_i32_0 = arith.constant 0 : i32
    %c0_i32_1 = arith.constant 0 : i32
    return %c0_i32, %c0_i32_0 : i32, i32
  }
  func.func @transform_6(%arg0: i32) -> (i32, i32) {
    %c0_i32 = arith.constant 0 : i32
    %c0_i32_0 = arith.constant 0 : i32
    %c0_i32_1 = arith.constant 0 : i32
    return %c0_i32, %c0_i32_0 : i32, i32
  }
  func.func @transform_7(%arg0: i32) -> (i32, i32) {
    %c0_i32 = arith.constant 0 : i32
    %c0_i32_0 = arith.constant 0 : i32
    %c0_i32_1 = arith.constant 0 : i32
    return %c0_i32, %c0_i32_0 : i32, i32
  }
  func.func @transform_8(%arg0: i32) -> (i32, i32) {
    %c0_i32 = arith.constant 0 : i32
    %c0_i32_0 = arith.constant 0 : i32
    %c0_i32_1 = arith.constant 0 : i32
    return %c0_i32, %c0_i32_0 : i32, i32
  }
  func.func @transform_9(%arg0: i32) -> (i32, i32) {
    %c0_i32 = arith.constant 0 : i32
    %c0_i32_0 = arith.constant 0 : i32
    %c0_i32_1 = arith.constant 0 : i32
    return %c0_i32, %c0_i32_0 : i32, i32
  }
  func.func @transform_10(%arg0: i32) -> (i32, i32) {
    %c0_i32 = arith.constant 0 : i32
    %c0_i32_0 = arith.constant 0 : i32
    %c0_i32_1 = arith.constant 0 : i32
    return %c0_i32, %c0_i32_0 : i32, i32
  }
  func.func @transform_11(%arg0: i32) -> (i32, i32) {
    %c0_i32 = arith.constant 0 : i32
    %c0_i32_0 = arith.constant 0 : i32
    return %arg0, %c0_i32 : i32, i32
  }
}

</mosaic_0001>

<llo_original>
// kernel: tpu_custom_call.1
$region0: #{tpu_custom_call.1}
  #allocation0 [shape = 'u32[]', space=smem, size = 0x4, offset = 0x4, fixed_abs, tag = 'smem constant byte address 0x4 - core index']
  #allocation1 [shape = 'u32[72,128]{1,0:T(1,128)}', space=vmem, size = 0x9000, scoped, tag = 'internal scratch']
  #allocation2 [shape = 'f32[1,1]{1,0:T(1,128)S(1)}', space=vmem, size = 0x200, scoped, tag = 'scoped memory for tpu_custom_call.1']
  %s0 = inlined_call_operand.hbm [shape: f32[16,32], index: 0, kind: input, shape index: {}]
  %s1 = inlined_call_operand.hbm [shape: f32[16,16], index: 1, kind: input, shape index: {}]
  %s2 = inlined_call_operand.hbm [shape: bf16[32,128], index: 2, kind: input, shape index: {}]
  %s3 = inlined_call_operand.hbm [shape: bf16[16,128], index: 3, kind: input, shape index: {}]
  %s4 = inlined_call_operand.vmem [shape: f32[1,128], index: 4, kind: input, shape index: {}]
  %s5 = inlined_call_operand.hbm [shape: bf16[128,128], index: 5, kind: input, shape index: {}]
  %s6 = inlined_call_operand.vmem [shape: f32[1,128], index: 6, kind: input, shape index: {}]
  %s7 = inlined_call_operand.hbm [shape: bf16[128,128], index: 7, kind: input, shape index: {}]
  %s8 = inlined_call_operand.vmem [shape: f32[1,128], index: 8, kind: input, shape index: {}]
  %s9 = inlined_call_operand.hbm [shape: bf16[128,128], index: 9, kind: input, shape index: {}]
  %s10 = inlined_call_operand.<no memory space> [shape: f32[1,1], index: 10, kind: input, shape index: {}]
  %s11 = inlined_call_operand.vmem [shape: f32[16,1], index: 11, kind: output, shape index: {}]
  %s12 = sld [smem:[#allocation0]]
  $region82: #{tpu_custom_call.1} parent=0
    _
  %s14 = ssub.s32 1, %s12
  %s15 = scalar_select 0, %s14, %s12
  %v16 = vstv %s10
  %17 = vst [vmem:[#allocation2] sm:$0x1] %v16
  $region1: #{tpu_custom_call.1} parent=0
    #allocation3 [shape = 'u8[8192]{0}', space=vmem, size = 0x2000, scoped, tag = 'input window, operand 0, single buffered']
    #allocation4 [shape = 's32[1]{0}', space=sflag, size = 0x4, scoped, tag = 'scoped memory for tpu_custom_call.1']
    #allocation5 [shape = 'u8[8192]{0}', space=vmem, size = 0x2000, scoped, tag = 'input window, operand 1, single buffered']
    #allocation6 [shape = 's32[1]{0}', space=sflag, size = 0x4, scoped, tag = 'scoped memory for tpu_custom_call.1']
    #allocation7 [shape = 'u8[8192]{0}', space=vmem, size = 0x2000, scoped, tag = 'input window, operand 2, single buffered']
    #allocation8 [shape = 'u8[4096]{0}', space=vmem, size = 0x1000, scoped, tag = 'input window, operand 3, single buffered']
    #allocation9 [shape = 's32[1]{0}', space=sflag, size = 0x4, scoped, tag = 'scoped memory for tpu_custom_call.1']
    #allocation10 [shape = 'u8[32768]{0}', space=vmem, size = 0x8000, scoped, tag = 'input window, operand 5, single buffered']
    #allocation11 [shape = 'u8[32768]{0}', space=vmem, size = 0x8000, scoped, tag = 'input window, operand 7, single buffered']
    #allocation12 [shape = 's32[1]{0}', space=sflag, size = 0x4, scoped, tag = 'scoped memory for tpu_custom_call.1']
    #allocation13 [shape = 'u8[32768]{0}', space=vmem, size = 0x8000, scoped, tag = 'input window, operand 9, single buffered']
    %18 = vsyncpa [#allocation4], 0
    %19 = vsyncpa [#allocation6], 0
    %20 = vsyncpa [#allocation9], 0
    %21 = vsyncpa [#allocation12], 0
    // Predicated region
    $region2: #{tpu_custom_call.1} parent=1 // pred_check
      _
    $region3: #{tpu_custom_call.1} parent=1 // pred_check_branch
      %23 = sbr.rel (0) target = $region5
    $region4: #{tpu_custom_call.1} parent=1 // pred_region
      %25 = vsyncadd [#allocation4], 0
      %s26 = sshll.u32 %s0, 4
      %s27 = int_to_ptr.hbm [resolvable:$true] %s26
      %s28 = sshll.u32 [#allocation3], 4
      %s29 = int_to_ptr.vmem [resolvable:$true] %s28
      %34 = dma.hbm_to_vmem [thread:$0]  %s27, 256, %s29, [#allocation4], 128, 128, 8
    $region5: #{tpu_custom_call.1} parent=1 // pred_fallthru
      _
    // Predicated region
    $region6: #{tpu_custom_call.1} parent=1 // pred_check
      _
    $region7: #{tpu_custom_call.1} parent=1 // pred_check_branch
      %36 = sbr.rel (0) target = $region9
    $region8: #{tpu_custom_call.1} parent=1 // pred_region
      %38 = vsyncadd [#allocation6], 0
      %s39 = sshll.u32 %s1, 4
      %s40 = int_to_ptr.hbm [resolvable:$true] %s39
      %s41 = sshll.u32 [#allocation5], 4
      %s42 = int_to_ptr.vmem [resolvable:$true] %s41
      %47 = dma.hbm_to_vmem [thread:$0]  %s40, 256, %s42, [#allocation6], 128, 128, 8
    $region9: #{tpu_custom_call.1} parent=1 // pred_fallthru
      _
    // Predicated region
    $region10: #{tpu_custom_call.1} parent=1 // pred_check
      _
    $region11: #{tpu_custom_call.1} parent=1 // pred_check_branch
      %49 = sbr.rel (0) target = $region13
    $region12: #{tpu_custom_call.1} parent=1 // pred_region
      %51 = vsyncadd [#allocation6], 0
      %s52 = sshll.u32 %s2, 4
      %s53 = int_to_ptr.hbm [resolvable:$true] %s52
      %s54 = sshll.u32 [#allocation7], 4
      %s55 = int_to_ptr.vmem [resolvable:$true] %s54
      %60 = dma.hbm_to_vmem [thread:$0]  %s53, 256, %s55, [#allocation6], 64, 64, 4
    $region13: #{tpu_custom_call.1} parent=1 // pred_fallthru
      _
    // Predicated region
    $region14: #{tpu_custom_call.1} parent=1 // pred_check
      _
    $region15: #{tpu_custom_call.1} parent=1 // pred_check_branch
      %62 = sbr.rel (0) target = $region17
    $region16: #{tpu_custom_call.1} parent=1 // pred_region
      %64 = vsyncadd [#allocation9], 0
      %s65 = sshll.u32 %s3, 4
      %s66 = int_to_ptr.hbm [resolvable:$true] %s65
      %s67 = sshll.u32 [#allocation8], 4
      %s68 = int_to_ptr.vmem [resolvable:$true] %s67
      %73 = dma.hbm_to_vmem [thread:$0]  %s66, 128, %s68, [#allocation9], 64, 64, 4
    $region17: #{tpu_custom_call.1} parent=1 // pred_fallthru
      _
    // Predicated region
    $region18: #{tpu_custom_call.1} parent=1 // pred_check
      _
    $region19: #{tpu_custom_call.1} parent=1 // pred_check_branch
      %75 = sbr.rel (0) target = $region21
    $region20: #{tpu_custom_call.1} parent=1 // pred_region
      _
    $region21: #{tpu_custom_call.1} parent=1 // pred_fallthru
      _
    // Predicated region
    $region22: #{tpu_custom_call.1} parent=1 // pred_check
      _
    $region23: #{tpu_custom_call.1} parent=1 // pred_check_branch
      %77 = sbr.rel (0) target = $region25
    $region24: #{tpu_custom_call.1} parent=1 // pred_region
      %79 = vsyncadd [#allocation9], 0
      %s80 = sshll.u32 %s5, 4
      %s81 = int_to_ptr.hbm [resolvable:$true] %s80
      %s82 = sshll.u32 [#allocation10], 4
      %s83 = int_to_ptr.vmem [resolvable:$true] %s82
      %88 = dma.hbm_to_vmem [thread:$0]  %s81, 1024, %s83, [#allocation9], 64, 64, 4
    $region25: #{tpu_custom_call.1} parent=1 // pred_fallthru
      _
    // Predicated region
    $region26: #{tpu_custom_call.1} parent=1 // pred_check
      _
    $region27: #{tpu_custom_call.1} parent=1 // pred_check_branch
      %90 = sbr.rel (0) target = $region29
    $region28: #{tpu_custom_call.1} parent=1 // pred_region
      _
    $region29: #{tpu_custom_call.1} parent=1 // pred_fallthru
      _
    // Predicated region
    $region30: #{tpu_custom_call.1} parent=1 // pred_check
      _
    $region31: #{tpu_custom_call.1} parent=1 // pred_check_branch
      %92 = sbr.rel (0) target = $region33
    $region32: #{tpu_custom_call.1} parent=1 // pred_region
      %94 = vsyncadd [#allocation12], 0
      %s95 = sshll.u32 %s7, 4
      %s96 = int_to_ptr.hbm [resolvable:$true] %s95
      %s97 = sshll.u32 [#allocation11], 4
      %s98 = int_to_ptr.vmem [resolvable:$true] %s97
      %103 = dma.hbm_to_vmem [thread:$0]  %s96, 1024, %s98, [#allocation12], 64, 64, 4
    $region33: #{tpu_custom_call.1} parent=1 // pred_fallthru
      _
    // Predicated region
    $region34: #{tpu_custom_call.1} parent=1 // pred_check
      _
    $region35: #{tpu_custom_call.1} parent=1 // pred_check_branch
      %105 = sbr.rel (0) target = $region37
    $region36: #{tpu_custom_call.1} parent=1 // pred_region
      _
    $region37: #{tpu_custom_call.1} parent=1 // pred_fallthru
      _
    // Predicated region
    $region38: #{tpu_custom_call.1} parent=1 // pred_check
      _
    $region39: #{tpu_custom_call.1} parent=1 // pred_check_branch
      %107 = sbr.rel (0) target = $region41
    $region40: #{tpu_custom_call.1} parent=1 // pred_region
      %109 = vsyncadd [#allocation12], 0
      %s110 = sshll.u32 %s9, 4
      %s111 = int_to_ptr.hbm [resolvable:$true] %s110
      %s112 = sshll.u32 [#allocation13], 4
      %s113 = int_to_ptr.vmem [resolvable:$true] %s112
      %118 = dma.hbm_to_vmem [thread:$0]  %s111, 1024, %s113, [#allocation12], 64, 64, 4
    $region41: #{tpu_custom_call.1} parent=1 // pred_fallthru
      _
    // Predicated region
    $region42: #{tpu_custom_call.1} parent=1 // pred_check
      _
    $region43: #{tpu_custom_call.1} parent=1 // pred_check_branch
      %120 = sbr.rel (0) target = $region45
    $region44: #{tpu_custom_call.1} parent=1 // pred_region
      _
    $region45: #{tpu_custom_call.1} parent=1 // pred_fallthru
      _
    // Predicated region
    $region46: #{tpu_custom_call.1} parent=1 // pred_check
      _
    $region47: #{tpu_custom_call.1} parent=1 // pred_check_branch
      %122 = sbr.rel (0) target = $region49
    $region48: #{tpu_custom_call.1} parent=1 // pred_region
      %124 = dma.done [#allocation4], 256
    $region49: #{tpu_custom_call.1} parent=1 // pred_fallthru
      _
    // Predicated region
    $region50: #{tpu_custom_call.1} parent=1 // pred_check
      _
    $region51: #{tpu_custom_call.1} parent=1 // pred_check_branch
      %126 = sbr.rel (0) target = $region53
    $region52: #{tpu_custom_call.1} parent=1 // pred_region
      %128 = dma.done [#allocation6], 256
    $region53: #{tpu_custom_call.1} parent=1 // pred_fallthru
      _
    // Predicated region
    $region54: #{tpu_custom_call.1} parent=1 // pred_check
      _
    $region55: #{tpu_custom_call.1} parent=1 // pred_check_branch
      %130 = sbr.rel (0) target = $region57
    $region56: #{tpu_custom_call.1} parent=1 // pred_region
      %132 = dma.done [#allocation6], 256
    $region57: #{tpu_custom_call.1} parent=1 // pred_fallthru
      _
    // Predicated region
    $region58: #{tpu_custom_call.1} parent=1 // pred_check
      _
    $region59: #{tpu_custom_call.1} parent=1 // pred_check_branch
      %134 = sbr.rel (0) target = $region61
    $region60: #{tpu_custom_call.1} parent=1 // pred_region
      %136 = dma.done [#allocation9], 128
    $region61: #{tpu_custom_call.1} parent=1 // pred_fallthru
      _
    // Predicated region
    $region62: #{tpu_custom_call.1} parent=1 // pred_check
      _
    $region63: #{tpu_custom_call.1} parent=1 // pred_check_branch
      %138 = sbr.rel (0) target = $region65
    $region64: #{tpu_custom_call.1} parent=1 // pred_region
      %140 = dma.done [#allocation9], 1024
    $region65: #{tpu_custom_call.1} parent=1 // pred_fallthru
      _
    // Predicated region
    $region66: #{tpu_custom_call.1} parent=1 // pred_check
      _
    $region67: #{tpu_custom_call.1} parent=1 // pred_check_branch
      %142 = sbr.rel (0) target = $region69
    $region68: #{tpu_custom_call.1} parent=1 // pred_region
      %144 = dma.done [#allocation12], 1024
    $region69: #{tpu_custom_call.1} parent=1 // pred_fallthru
      _
    // Predicated region
    $region70: #{tpu_custom_call.1} parent=1 // pred_check
      _
    $region71: #{tpu_custom_call.1} parent=1 // pred_check_branch
      %146 = sbr.rel (0) target = $region73
    $region72: #{tpu_custom_call.1} parent=1 // pred_region
      %148 = dma.done [#allocation12], 1024
    $region73: #{tpu_custom_call.1} parent=1 // pred_fallthru
      _
    %v150 = vld [vmem:[#allocation3] sm:$0xff]
    %v151 = vld [vmem:[#allocation3 + $0x8] sm:$0xff]
    %v152 = vpack.c.bf16 %v151, %v150
    %v153 = vld [vmem:[#allocation7] sm:$0xf]
    %v154 = vld [vmem:[#allocation7 + $0x4] sm:$0xf]
    %v155 = vld [vmem:[#allocation7 + $0x8] sm:$0xf]
    %v156 = vld [vmem:[#allocation7 + $0xc] sm:$0xf]
    %v157 = vld [vmem:[#allocation5] sm:$0xff]
    %v158 = vld [vmem:[#allocation5 + $0x8] sm:$0xff]
    %v159 = vpack.c.bf16 %v158, %v157
    %v160 = vld [vmem:[#allocation8] sm:$0xf]
    %v161 = vld [vmem:[#allocation8 + $0x4] sm:$0xf]
    %v164 = vunpack.c.l.b16 %v160
    %v165 = vunpack.c.l.b16 %v161
    %v166 = vpack.c.b16 %v165, %v164
    %vm168 = vcmask 130048
    %v170 = vsel %vm168, %v159, 0
    %172 = vmatpush.bf16.msra.mxu0 0
    %173 = vmatpush.bf16.msra.mxu0 0
    %174 = vmatpush.bf16.msra.mxu0 0
    %175 = vmatpush.bf16.msra.mxu0 0
    %176 = vmatpush.bf16.msra.mxu0 0
    %177 = vmatpush.bf16.msra.mxu0 0
    %178 = vmatpush.bf16.msra.mxu0 0
    %179 = vmatpush.bf16.msra.mxu0 %v166
    %180 = vmatmul.bf16.gmra.mxu0 %v170
    %v181 = vpop.f32.mrf.mxu0
    %v182 = vadd.f32 0.0, %v181
    %v183 = vpop.f32.mrf.mxu0
    %v184 = vadd.f32 0.0, %v183
    %185 = vdwg.mxu0
    %v190 = vunpack.c.l.b16 %v153
    %v191 = vunpack.c.l.b16 %v154
    %v192 = vunpack.c.l.b16 %v155
    %v193 = vunpack.c.l.b16 %v156
    %v194 = vpack.c.b16 %v191, %v190
    %v195 = vpack.c.b16 %v193, %v192
    %vm198 = vcmask 261120
    %v200 = vsel %vm198, %v152, 0
    %202 = vmatpush.bf16.msra.mxu0 0
    %203 = vmatpush.bf16.msra.mxu0 0
    %204 = vmatpush.bf16.msra.mxu0 0
    %205 = vmatpush.bf16.msra.mxu0 0
    %206 = vmatpush.bf16.msra.mxu0 0
    %207 = vmatpush.bf16.msra.mxu0 0
    %208 = vmatpush.bf16.msra.mxu0 %v195
    %209 = vmatpush.bf16.msra.mxu0 %v194
    %210 = vmatmul.bf16.gmra.mxu0 %v200
    %v211 = vpop.f32.mrf.mxu0
    %v212 = vadd.f32 %v182, %v211
    %v213 = vpop.f32.mrf.mxu0
    %v214 = vadd.f32 %v184, %v213
    %215 = vdwg.mxu0
    %v216 = vld [vmem:[%s4] sm:$0x1]
    %v218 = vperm.slane %v216, 0
    %v220 = vadd.f32 %v212, %v218
    %v221 = vadd.f32 %v214, %v218
    %v222 = vmul.f32 %v220, 0.01
    %v223 = vmul.f32 %v221, 0.01
    %v224 = vmax.f32 %v220, %v222
    %v225 = vmax.f32 %v221, %v223
    %v226 = vpack.c.bf16 %v225, %v224
    %v227 = vld [vmem:[#allocation10] sm:$0xf]
    %v228 = vld [vmem:[#allocation10 + $0x4] sm:$0xf]
    %v229 = vld [vmem:[#allocation10 + $0x8] sm:$0xf]
    %v230 = vld [vmem:[#allocation10 + $0xc] sm:$0xf]
    %v231 = vld [vmem:[#allocation10 + $0x10] sm:$0xf]
    %v232 = vld [vmem:[#allocation10 + $0x14] sm:$0xf]
    %v233 = vld [vmem:[#allocation10 + $0x18] sm:$0xf]
    %v234 = vld [vmem:[#allocation10 + $0x1c] sm:$0xf]
    %v235 = vld [vmem:[#allocation10 + $0x20] sm:$0xf]
    %v236 = vld [vmem:[#allocation10 + $0x24] sm:$0xf]
    %v237 = vld [vmem:[#allocation10 + $0x28] sm:$0xf]
    %v238 = vld [vmem:[#allocation10 + $0x2c] sm:$0xf]
    %v239 = vld [vmem:[#allocation10 + $0x30] sm:$0xf]
    %v240 = vld [vmem:[#allocation10 + $0x34] sm:$0xf]
    %v241 = vld [vmem:[#allocation10 + $0x38] sm:$0xf]
    %v242 = vld [vmem:[#allocation10 + $0x3c] sm:$0xf]
    %v243 = vld [vmem:[%s6] sm:$0x1]
    %v245 = vperm.slane %v243, 0
    %v263 = vunpack.c.l.b16 %v227
    %v264 = vunpack.c.l.b16 %v228
    %v265 = vunpack.c.l.b16 %v229
    %v266 = vunpack.c.l.b16 %v230
    %v267 = vunpack.c.l.b16 %v231
    %v268 = vunpack.c.l.b16 %v232
    %v269 = vunpack.c.l.b16 %v233
    %v270 = vunpack.c.l.b16 %v234
    %v271 = vunpack.c.l.b16 %v235
    %v272 = vunpack.c.l.b16 %v236
    %v273 = vunpack.c.l.b16 %v237
    %v274 = vunpack.c.l.b16 %v238
    %v275 = vunpack.c.l.b16 %v239
    %v276 = vunpack.c.l.b16 %v240
    %v277 = vunpack.c.l.b16 %v241
    %v278 = vunpack.c.l.b16 %v242
    %v279 = vpack.c.b16 %v264, %v263
    %v280 = vpack.c.b16 %v266, %v265
    %v281 = vpack.c.b16 %v268, %v267
    %v282 = vpack.c.b16 %v270, %v269
    %v283 = vpack.c.b16 %v272, %v271
    %v284 = vpack.c.b16 %v274, %v273
    %v285 = vpack.c.b16 %v276, %v275
    %v286 = vpack.c.b16 %v278, %v277
    %295 = vmatpush.bf16.msra.mxu0 %v286
    %296 = vmatpush.bf16.msra.mxu0 %v285
    %297 = vmatpush.bf16.msra.mxu0 %v284
    %298 = vmatpush.bf16.msra.mxu0 %v283
    %299 = vmatpush.bf16.msra.mxu0 %v282
    %300 = vmatpush.bf16.msra.mxu0 %v281
    %301 = vmatpush.bf16.msra.mxu0 %v280
    %302 = vmatpush.bf16.msra.mxu0 %v279
    %303 = vmatmul.bf16.gmra.mxu0 %v226
    %v304 = vpop.f32.mrf.mxu0
    %v305 = vadd.f32 %v245, %v304
    %v306 = vpop.f32.mrf.mxu0
    %v307 = vadd.f32 %v245, %v306
    %308 = vdwg.mxu0
    %v309 = vmul.f32 %v305, 0.01
    %v310 = vmul.f32 %v307, 0.01
    %v311 = vmax.f32 %v305, %v309
    %v312 = vmax.f32 %v307, %v310
    %v313 = vpack.c.bf16 %v312, %v311
    %v314 = vld [vmem:[#allocation11] sm:$0xf]
    %v315 = vld [vmem:[#allocation11 + $0x4] sm:$0xf]
    %v316 = vld [vmem:[#allocation11 + $0x8] sm:$0xf]
    %v317 = vld [vmem:[#allocation11 + $0xc] sm:$0xf]
    %v318 = vld [vmem:[#allocation11 + $0x10] sm:$0xf]
    %v319 = vld [vmem:[#allocation11 + $0x14] sm:$0xf]
    %v320 = vld [vmem:[#allocation11 + $0x18] sm:$0xf]
    %v321 = vld [vmem:[#allocation11 + $0x1c] sm:$0xf]
    %v322 = vld [vmem:[#allocation11 + $0x20] sm:$0xf]
    %v323 = vld [vmem:[#allocation11 + $0x24] sm:$0xf]
    %v324 = vld [vmem:[#allocation11 + $0x28] sm:$0xf]
    %v325 = vld [vmem:[#allocation11 + $0x2c] sm:$0xf]
    %v326 = vld [vmem:[#allocation11 + $0x30] sm:$0xf]
    %v327 = vld [vmem:[#allocation11 + $0x34] sm:$0xf]
    %v328 = vld [vmem:[#allocation11 + $0x38] sm:$0xf]
    %v329 = vld [vmem:[#allocation11 + $0x3c] sm:$0xf]
    %v330 = vld [vmem:[%s8] sm:$0x1]
    %v332 = vperm.slane %v330, 0
    %v350 = vunpack.c.l.b16 %v314
    %v351 = vunpack.c.l.b16 %v315
    %v352 = vunpack.c.l.b16 %v316
    %v353 = vunpack.c.l.b16 %v317
    %v354 = vunpack.c.l.b16 %v318
    %v355 = vunpack.c.l.b16 %v319
    %v356 = vunpack.c.l.b16 %v320
    %v357 = vunpack.c.l.b16 %v321
    %v358 = vunpack.c.l.b16 %v322
    %v359 = vunpack.c.l.b16 %v323
    %v360 = vunpack.c.l.b16 %v324
    %v361 = vunpack.c.l.b16 %v325
    %v362 = vunpack.c.l.b16 %v326
    %v363 = vunpack.c.l.b16 %v327
    %v364 = vunpack.c.l.b16 %v328
    %v365 = vunpack.c.l.b16 %v329
    %v366 = vpack.c.b16 %v351, %v350
    %v367 = vpack.c.b16 %v353, %v352
    %v368 = vpack.c.b16 %v355, %v354
    %v369 = vpack.c.b16 %v357, %v356
    %v370 = vpack.c.b16 %v359, %v358
    %v371 = vpack.c.b16 %v361, %v360
    %v372 = vpack.c.b16 %v363, %v362
    %v373 = vpack.c.b16 %v365, %v364
    %382 = vmatpush.bf16.msra.mxu0 %v373
    %383 = vmatpush.bf16.msra.mxu0 %v372
    %384 = vmatpush.bf16.msra.mxu0 %v371
    %385 = vmatpush.bf16.msra.mxu0 %v370
    %386 = vmatpush.bf16.msra.mxu0 %v369
    %387 = vmatpush.bf16.msra.mxu0 %v368
    %388 = vmatpush.bf16.msra.mxu0 %v367
    %389 = vmatpush.bf16.msra.mxu0 %v366
    %390 = vmatmul.bf16.gmra.mxu0 %v313
    %v391 = vpop.f32.mrf.mxu0
    %v392 = vadd.f32 %v332, %v391
    %v393 = vpop.f32.mrf.mxu0
    %v394 = vadd.f32 %v332, %v393
    %395 = vdwg.mxu0
    %v396 = vmul.f32 %v392, 0.01
    %v397 = vmul.f32 %v394, 0.01
    %v398 = vmax.f32 %v392, %v396
    %v399 = vmax.f32 %v394, %v397
    %v400 = vpack.c.bf16 %v399, %v398
    %v401 = vld [vmem:[#allocation13] sm:$0xf]
    %v402 = vld [vmem:[#allocation13 + $0x4] sm:$0xf]
    %v403 = vld [vmem:[#allocation13 + $0x8] sm:$0xf]
    %v404 = vld [vmem:[#allocation13 + $0xc] sm:$0xf]
    %v405 = vld [vmem:[#allocation13 + $0x10] sm:$0xf]
    %v406 = vld [vmem:[#allocation13 + $0x14] sm:$0xf]
    %v407 = vld [vmem:[#allocation13 + $0x18] sm:$0xf]
    %v408 = vld [vmem:[#allocation13 + $0x1c] sm:$0xf]
    %v409 = vld [vmem:[#allocation13 + $0x20] sm:$0xf]
    %v410 = vld [vmem:[#allocation13 + $0x24] sm:$0xf]
    %v411 = vld [vmem:[#allocation13 + $0x28] sm:$0xf]
    %v412 = vld [vmem:[#allocation13 + $0x2c] sm:$0xf]
    %v413 = vld [vmem:[#allocation13 + $0x30] sm:$0xf]
    %v414 = vld [vmem:[#allocation13 + $0x34] sm:$0xf]
    %v415 = vld [vmem:[#allocation13 + $0x38] sm:$0xf]
    %v416 = vld [vmem:[#allocation13 + $0x3c] sm:$0xf]
    %v433 = vunpack.c.l.b16 %v401
    %v434 = vunpack.c.l.b16 %v402
    %v435 = vunpack.c.l.b16 %v403
    %v436 = vunpack.c.l.b16 %v404
    %v437 = vunpack.c.l.b16 %v405
    %v438 = vunpack.c.l.b16 %v406
    %v439 = vunpack.c.l.b16 %v407
    %v440 = vunpack.c.l.b16 %v408
    %v441 = vunpack.c.l.b16 %v409
    %v442 = vunpack.c.l.b16 %v410
    %v443 = vunpack.c.l.b16 %v411
    %v444 = vunpack.c.l.b16 %v412
    %v445 = vunpack.c.l.b16 %v413
    %v446 = vunpack.c.l.b16 %v414
    %v447 = vunpack.c.l.b16 %v415
    %v448 = vunpack.c.l.b16 %v416
    %v449 = vpack.c.b16 %v434, %v433
    %v450 = vpack.c.b16 %v436, %v435
    %v451 = vpack.c.b16 %v438, %v437
    %v452 = vpack.c.b16 %v440, %v439
    %v453 = vpack.c.b16 %v442, %v441
    %v454 = vpack.c.b16 %v444, %v443
    %v455 = vpack.c.b16 %v446, %v445
    %v456 = vpack.c.b16 %v448, %v447
    %465 = vmatpush.bf16.msra.mxu0 %v456
    %466 = vmatpush.bf16.msra.mxu0 %v455
    %467 = vmatpush.bf16.msra.mxu0 %v454
    %468 = vmatpush.bf16.msra.mxu0 %v453
    %469 = vmatpush.bf16.msra.mxu0 %v452
    %470 = vmatpush.bf16.msra.mxu0 %v451
    %471 = vmatpush.bf16.msra.mxu0 %v450
    %472 = vmatpush.bf16.msra.mxu0 %v449
    %473 = vmatmul.bf16.gmra.mxu0 %v400
    %v474 = vpop.f32.mrf.mxu0
    %v475 = vadd.f32 0.0, %v474
    %v476 = vpop.f32.mrf.mxu0
    %v477 = vadd.f32 0.0, %v476
    %478 = vdwg.mxu0
    %v479 = vld [vmem:[#allocation2] sm:$0x1]
    %v481 = vperm.slane %v479, 0
    %v483 = vadd.f32 %v475, %v481
    %v484 = vadd.f32 %v477, %v481
    %vm485 = vcmask 7168
    %486 = vst.msk [vmem:[%s11] sm:$0xff] %vm485, %v483
    %487 = vst.msk [vmem:[%s11 + $0x8] sm:$0xff] %vm485, %v484
    // Predicated region
    $region74: #{tpu_custom_call.1} parent=1 // pred_check
      _
    $region75: #{tpu_custom_call.1} parent=1 // pred_check_branch
      %489 = sbr.rel (0) target = $region77
    $region76: #{tpu_custom_call.1} parent=1 // pred_region
      _
    $region77: #{tpu_custom_call.1} parent=1 // pred_fallthru
      _
    // Predicated region
    $region78: #{tpu_custom_call.1} parent=1 // pred_check
      _
    $region79: #{tpu_custom_call.1} parent=1 // pred_check_branch
      %491 = sbr.rel (0) target = $region81
    $region80: #{tpu_custom_call.1} parent=1 // pred_region
      _
    $region81: #{tpu_custom_call.1} parent=1 // pred_fallthru
      _
    %492 = vsyncpa [#allocation4], 1
    %493 = vsyncpa [#allocation6], 1
    %494 = vsyncpa [#allocation9], 1
    %495 = vsyncpa [#allocation12], 1

</llo_original>
